<compile_context>
chip_gen: v6e
topology: v6e:2x2x1
jax: 0.10.0
libtpu: 0.0.40
codegen_flags: <defaults>
</compile_context>

<pallas_src>
import jax
import jax.numpy as jnp
from jax.experimental import pallas as pl
from jax.experimental.pallas import tpu as pltpu

# ----------------------------- config (toy sizes) -----------------------------
HIDDEN = 32                  # config.hidden_size
INNER = 4 * HIDDEN           # intermediate_size (n_inner = None -> 4 * hidden)
MAX_TOKEN_TILE = 256         # rows per grid step at scale (>=128 per perf review)
# activation_function = "gelu" (exact / erf-based, matching F.gelu default)


def _gelu_exact(x):
    # Exact (erf-based) GELU = F.gelu default. The tanh approximation would move
    # work from VPU to EUP but changes numerics, so keep exact for parity.
    return 0.5 * x * (1.0 + jax.lax.erf(x * jnp.float32(0.7071067811865476)))


def _round_up(n, m):
    return (n + m - 1) // m * m


# ----------------------------- Pallas kernel ----------------------------------
def mlp_kernel(x_ref, wfc_ref, bfc_ref, wpr_ref, bpr_ref, o_ref):
    """Fused c_fc -> GELU -> c_proj for one (TOKEN_TILE, H) tile of tokens."""
    x = x_ref[...].astype(jnp.bfloat16)                                # bf16 MXU operand
    h = jnp.dot(x, wfc_ref[...], preferred_element_type=jnp.float32)   # (TM, INNER) f32 acc
    h = _gelu_exact(h + bfc_ref[...])                                  # bias + GELU in f32
    y = jnp.dot(h.astype(jnp.bfloat16), wpr_ref[...],
                preferred_element_type=jnp.float32)                    # (TM, H) f32 acc
    o_ref[...] = (y + bpr_ref[...]).astype(o_ref.dtype)
    # dropout: eval-mode identity


# ----------------------------- wrapper -----------------------------------------
def tfmr_mlp_forward(hidden_states, w_fc, b_fc, w_pr, b_pr, *,
                     max_token_tile=MAX_TOKEN_TILE):
    """Mirrors TfmrMLP.forward: gelu(x @ w_fc + b_fc) @ w_pr + b_pr (dropout=identity)."""
    orig_shape = hidden_states.shape
    H = orig_shape[-1]
    inner = w_fc.shape[-1]

    x = hidden_states.reshape(-1, H)
    n_tok = x.shape[0]

    # Token tile: as large as possible up to max_token_tile; multiple of 8 (sublane).
    token_tile = min(max_token_tile, _round_up(n_tok, 8))
    grid = (pl.cdiv(n_tok, token_tile),)  # ragged last block handled by Pallas masking;
                                          # no host-side concat/pad of the activations.

    # Weights as bf16 MXU operands. In a real model the parameters would already be
    # stored in bf16; the cast here is per-call only for this self-contained script.
    w_fc_b = w_fc.astype(jnp.bfloat16)
    w_pr_b = w_pr.astype(jnp.bfloat16)
    b_fc2 = b_fc.reshape(1, inner).astype(jnp.float32)
    b_pr2 = b_pr.reshape(1, H).astype(jnp.float32)

    # Constant index_map + single buffer: weights/biases stay resident in VMEM and
    # are not double-buffered (halves weight VMEM at GPT-2 size; key for v7x 64 MiB).
    def resident_spec(shape):
        return pl.BlockSpec(shape, lambda i: (0, 0), pipeline_mode=pl.Buffered(1))

    # Explicit VMEM budget (single-buffered bf16 weights + f32 biases +
    # double-buffered x/out tiles + f32 intermediate), clamped to v7x's 64 MiB.
    itemsize = jnp.dtype(hidden_states.dtype).itemsize
    vmem_bytes = (
        2 * (H * inner + inner * H)            # bf16 weights, single-buffered
        + 4 * (inner + H)                      # f32 biases
        + 2 * 2 * token_tile * H * itemsize    # double-buffered x + out tiles
        + 3 * token_tile * inner * 4           # f32 intermediate (+ bf16 copy headroom)
        + (4 << 20)                            # slack
    )
    vmem_bytes = int(min(max(vmem_bytes, 16 << 20), 64 << 20))

    out = pl.pallas_call(
        mlp_kernel,
        out_shape=jax.ShapeDtypeStruct((n_tok, H), hidden_states.dtype),
        grid_spec=pltpu.PrefetchScalarGridSpec(
            num_scalar_prefetch=0,
            grid=grid,
            in_specs=[
                pl.BlockSpec((token_tile, H), lambda i: (i, 0)),  # x tile (streamed)
                resident_spec((H, inner)),                        # w_fc (bf16, resident)
                resident_spec((1, inner)),                        # b_fc (f32)
                resident_spec((inner, H)),                        # w_pr (bf16, resident)
                resident_spec((1, H)),                            # b_pr (f32)
            ],
            out_specs=pl.BlockSpec((token_tile, H), lambda i: (i, 0)),
        ),
        compiler_params=pltpu.CompilerParams(
            dimension_semantics=("parallel",),   # v7x: shard token tiles across both TCs
            vmem_limit_bytes=vmem_bytes,
        ),
    )(x, w_fc_b, b_fc2, w_pr_b, b_pr2)

    return out.reshape(orig_shape)


_fwd_jit = jax.jit(tfmr_mlp_forward)


# ----------------------------- main --------------------------------------------
if __name__ == "__main__":
    key = jax.random.PRNGKey(0)
    kx, k1, k2, k3, k4 = jax.random.split(key, 5)

    B, S = 2, 8
    hidden_states = jax.random.normal(kx, (B, S, HIDDEN), jnp.float32)

    # TransposeLinear stores weight as (in_features, out_features): x @ W + b
    w_fc = 0.02 * jax.random.normal(k1, (HIDDEN, INNER), jnp.float32)   # c_fc
    b_fc = 0.02 * jax.random.normal(k2, (INNER,), jnp.float32)
    w_pr = 0.02 * jax.random.normal(k3, (INNER, HIDDEN), jnp.float32)   # c_proj
    b_pr = 0.02 * jax.random.normal(k4, (HIDDEN,), jnp.float32)

    out = jax.block_until_ready(_fwd_jit(hidden_states, w_fc, b_fc, w_pr, b_pr))

    # pure-JAX reference of the same math (bf16 MXU operands, f32 accumulation)
    def _ref(x):
        xb = x.reshape(-1, HIDDEN).astype(jnp.bfloat16)
        h = jnp.dot(xb, w_fc.astype(jnp.bfloat16),
                    preferred_element_type=jnp.float32) + b_fc
        h = _gelu_exact(h)
        y = jnp.dot(h.astype(jnp.bfloat16), w_pr.astype(jnp.bfloat16),
                    preferred_element_type=jnp.float32) + b_pr
        return y.reshape(B, S, HIDDEN).astype(hidden_states.dtype)

    ref = jax.block_until_ready(jax.jit(_ref)(hidden_states))

    assert out.shape == (B, S, HIDDEN)
    if not jnp.allclose(out, ref, atol=1e-3, rtol=1e-3):
        raise AssertionError("Pallas output does not match reference")

    print("KERNEL_OK")
</pallas_src>

<mosaic_0001>
module attributes {stable_mosaic.version = 11 : i64} {
  func.func @mlp_kernel(%arg0: i32, %arg1: memref<16x32xf32, #tpu.memory_space<vmem>>, %arg2: memref<32x128xbf16, #tpu.memory_space<vmem>>, %arg3: memref<1x128xf32, #tpu.memory_space<vmem>>, %arg4: memref<128x32xbf16, #tpu.memory_space<vmem>>, %arg5: memref<1x32xf32, #tpu.memory_space<vmem>>, %arg6: memref<16x32xf32, #tpu.memory_space<vmem>>) attributes {dimension_semantics = [#tpu.dimension_semantics<parallel>], iteration_bounds = array<i64: 1>, scalar_prefetch = 0 : i64, scratch_operands = 0 : i64, tpu.core_type = #tpu.core_type<tc>, window_params = [{transform_indices = @transform_0, window_bounds = array<i64: 16, 32>}, {pipeline_mode = #tpu.pipeline_mode<synchronous>, transform_indices = @transform_1, window_bounds = array<i64: 32, 128>}, {pipeline_mode = #tpu.pipeline_mode<synchronous>, transform_indices = @transform_2, window_bounds = array<i64: 1, 128>}, {pipeline_mode = #tpu.pipeline_mode<synchronous>, transform_indices = @transform_3, window_bounds = array<i64: 128, 32>}, {pipeline_mode = #tpu.pipeline_mode<synchronous>, transform_indices = @transform_4, window_bounds = array<i64: 1, 32>}, {transform_indices = @transform_5, window_bounds = array<i64: 16, 32>}]} {
    %c0 = arith.constant 0 : index
    %c0_0 = arith.constant 0 : index
    %0 = vector.load %arg1[%c0, %c0_0] : memref<16x32xf32, #tpu.memory_space<vmem>>, vector<16x32xf32>
    %1 = arith.truncf %0 : vector<16x32xf32> to vector<16x32xbf16>
    %c0_1 = arith.constant 0 : index
    %c0_2 = arith.constant 0 : index
    %2 = vector.load %arg2[%c0_1, %c0_2] : memref<32x128xbf16, #tpu.memory_space<vmem>>, vector<32x128xbf16>
    %cst = arith.constant dense<0.000000e+00> : vector<16x128xf32>
    %3 = tpu.matmul %1, %2, %cst {dimension_numbers = #tpu.dot_dimension_numbers<[1], [0], [0], [1], [0, 0, 1, 1], [], []>} : vector<16x32xbf16>, vector<32x128xbf16>, vector<16x128xf32> -> vector<16x128xf32>
    %c0_3 = arith.constant 0 : index
    %c0_4 = arith.constant 0 : index
    %4 = vector.load %arg3[%c0_3, %c0_4] : memref<1x128xf32, #tpu.memory_space<vmem>>, vector<1x128xf32>
    %5 = vector.broadcast %4 : vector<1x128xf32> to vector<16x128xf32>
    %6 = arith.addf %3, %5 : vector<16x128xf32>
    %cst_5 = arith.constant 5.000000e-01 : f32
    %7 = vector.broadcast %cst_5 : f32 to vector<16x128xf32>
    %8 = arith.mulf %7, %6 : vector<16x128xf32>
    %cst_6 = arith.constant 0.707106769 : f32
    %9 = vector.broadcast %cst_6 : f32 to vector<16x128xf32>
    %10 = arith.mulf %6, %9 : vector<16x128xf32>
    %11 = math.erf %10 : vector<16x128xf32>
    %cst_7 = arith.constant 1.000000e+00 : f32
    %12 = vector.broadcast %cst_7 : f32 to vector<16x128xf32>
    %13 = arith.addf %12, %11 : vector<16x128xf32>
    %14 = arith.mulf %8, %13 : vector<16x128xf32>
    %15 = arith.truncf %14 : vector<16x128xf32> to vector<16x128xbf16>
    %c0_8 = arith.constant 0 : index
    %c0_9 = arith.constant 0 : index
    %16 = vector.load %arg4[%c0_8, %c0_9] : memref<128x32xbf16, #tpu.memory_space<vmem>>, vector<128x32xbf16>
    %cst_10 = arith.constant dense<0.000000e+00> : vector<16x32xf32>
    %17 = tpu.matmul %15, %16, %cst_10 {dimension_numbers = #tpu.dot_dimension_numbers<[1], [0], [0], [1], [0, 0, 1, 1], [], []>} : vector<16x128xbf16>, vector<128x32xbf16>, vector<16x32xf32> -> vector<16x32xf32>
    %c0_11 = arith.constant 0 : index
    %c0_12 = arith.constant 0 : index
    %18 = vector.load %arg5[%c0_11, %c0_12] : memref<1x32xf32, #tpu.memory_space<vmem>>, vector<1x32xf32>
    %19 = vector.broadcast %18 : vector<1x32xf32> to vector<16x32xf32>
    %20 = arith.addf %17, %19 : vector<16x32xf32>
    %c0_13 = arith.constant 0 : index
    %c0_14 = arith.constant 0 : index
    %21 = vector.load %arg6[%c0_13, %c0_14] : memref<16x32xf32, #tpu.memory_space<vmem>>, vector<16x32xf32>
    tpu.vector_store %arg6[%c0_13, %c0_14], %20 {strides = array<i32>} : memref<16x32xf32, #tpu.memory_space<vmem>>, vector<16x32xf32>,
    return
  }
  func.func @transform_0(%arg0: i32) -> (i32, i32) {
    %c0_i32 = arith.constant 0 : i32
    %c0_i32_0 = arith.constant 0 : i32
    return %arg0, %c0_i32 : i32, i32
  }
  func.func @transform_1(%arg0: i32) -> (i32, i32) {
    %c0_i32 = arith.constant 0 : i32
    %c0_i32_0 = arith.constant 0 : i32
    %c0_i32_1 = arith.constant 0 : i32
    return %c0_i32, %c0_i32_0 : i32, i32
  }
  func.func @transform_2(%arg0: i32) -> (i32, i32) {
    %c0_i32 = arith.constant 0 : i32
    %c0_i32_0 = arith.constant 0 : i32
    %c0_i32_1 = arith.constant 0 : i32
    return %c0_i32, %c0_i32_0 : i32, i32
  }
  func.func @transform_3(%arg0: i32) -> (i32, i32) {
    %c0_i32 = arith.constant 0 : i32
    %c0_i32_0 = arith.constant 0 : i32
    %c0_i32_1 = arith.constant 0 : i32
    return %c0_i32, %c0_i32_0 : i32, i32
  }
  func.func @transform_4(%arg0: i32) -> (i32, i32) {
    %c0_i32 = arith.constant 0 : i32
    %c0_i32_0 = arith.constant 0 : i32
    %c0_i32_1 = arith.constant 0 : i32
    return %c0_i32, %c0_i32_0 : i32, i32
  }
  func.func @transform_5(%arg0: i32) -> (i32, i32) {
    %c0_i32 = arith.constant 0 : i32
    %c0_i32_0 = arith.constant 0 : i32
    return %arg0, %c0_i32 : i32, i32
  }
}

</mosaic_0001>

<llo_original>
// kernel: tfmr_mlp_forward.1
$region0: #{tfmr_mlp_forward.1}
  #allocation0 [shape = 'u32[]', space=smem, size = 0x4, offset = 0x4, fixed_abs, tag = 'smem constant byte address 0x4 - core index']
  #allocation1 [shape = 'u32[144,128]{1,0:T(1,128)}', space=vmem, size = 0x12000, scoped, tag = 'internal scratch']
  %s0 = inlined_call_operand.vmem [shape: f32[16,32], index: 0, kind: input, shape index: {}]
  %s1 = inlined_call_operand.vmem [shape: bf16[32,128], index: 1, kind: input, shape index: {}]
  %s2 = inlined_call_operand.vmem [shape: f32[1,128], index: 2, kind: input, shape index: {}]
  %s3 = inlined_call_operand.vmem [shape: bf16[128,32], index: 3, kind: input, shape index: {}]
  %s4 = inlined_call_operand.vmem [shape: f32[1,32], index: 4, kind: input, shape index: {}]
  %s5 = inlined_call_operand.hbm [shape: f32[16,32], index: 5, kind: output, shape index: {}]
  %s6 = sld [smem:[#allocation0]]
  $region30: #{tfmr_mlp_forward.1} parent=0
    _
  %s8 = ssub.s32 1, %s6
  %s9 = scalar_select 0, %s8, %s6
  $region1: #{tfmr_mlp_forward.1} parent=0
    #allocation2 [shape = 'u8[8192]{0}', space=vmem, size = 0x2000, scoped, tag = 'output window, operand 0, single buffered']
    #allocation3 [shape = 's32[1]{0}', space=sflag, size = 0x4, scoped, tag = 'scoped memory for tfmr_mlp_forward.1']
    %10 = vsyncpa [#allocation3], 0
    // Predicated region
    $region2: #{tfmr_mlp_forward.1} parent=1 // pred_check
      _
    $region3: #{tfmr_mlp_forward.1} parent=1 // pred_check_branch
      %12 = sbr.rel (0) target = $region5
    $region4: #{tfmr_mlp_forward.1} parent=1 // pred_region
      _
    $region5: #{tfmr_mlp_forward.1} parent=1 // pred_fallthru
      _
    // Predicated region
    $region6: #{tfmr_mlp_forward.1} parent=1 // pred_check
      _
    $region7: #{tfmr_mlp_forward.1} parent=1 // pred_check_branch
      %14 = sbr.rel (0) target = $region9
    $region8: #{tfmr_mlp_forward.1} parent=1 // pred_region
      _
    $region9: #{tfmr_mlp_forward.1} parent=1 // pred_fallthru
      _
    // Predicated region
    $region10: #{tfmr_mlp_forward.1} parent=1 // pred_check
      _
    $region11: #{tfmr_mlp_forward.1} parent=1 // pred_check_branch
      %16 = sbr.rel (0) target = $region13
    $region12: #{tfmr_mlp_forward.1} parent=1 // pred_region
      _
    $region13: #{tfmr_mlp_forward.1} parent=1 // pred_fallthru
      _
    // Predicated region
    $region14: #{tfmr_mlp_forward.1} parent=1 // pred_check
      _
    $region15: #{tfmr_mlp_forward.1} parent=1 // pred_check_branch
      %18 = sbr.rel (0) target = $region17
    $region16: #{tfmr_mlp_forward.1} parent=1 // pred_region
      _
    $region17: #{tfmr_mlp_forward.1} parent=1 // pred_fallthru
      _
    // Predicated region
    $region18: #{tfmr_mlp_forward.1} parent=1 // pred_check
      _
    $region19: #{tfmr_mlp_forward.1} parent=1 // pred_check_branch
      %20 = sbr.rel (0) target = $region21
    $region20: #{tfmr_mlp_forward.1} parent=1 // pred_region
      _
    $region21: #{tfmr_mlp_forward.1} parent=1 // pred_fallthru
      _
    %v22 = vld [vmem:[%s0] sm:$0xff]
    %v23 = vld [vmem:[%s0 + $0x8] sm:$0xff]
    %v24 = vpack.c.bf16 %v23, %v22
    %v25 = vld [vmem:[%s1] sm:$0xf]
    %v26 = vld [vmem:[%s1 + $0x4] sm:$0xf]
    %v27 = vld [vmem:[%s1 + $0x8] sm:$0xf]
    %v28 = vld [vmem:[%s1 + $0xc] sm:$0xf]
    %v29 = vld [vmem:[%s2] sm:$0x1]
    %v31 = vlaneseq
    %v32 = vshrl.u32 %v31, 7
    %v33 = vsub.s32 0, %v32
    %v34 = vrot.slane %v29, %v33
    %v40 = vunpack.c.l.b16 %v25
    %v41 = vunpack.c.l.b16 %v26
    %v42 = vunpack.c.l.b16 %v27
    %v43 = vunpack.c.l.b16 %v28
    %v44 = vpack.c.b16 %v41, %v40
    %v45 = vpack.c.b16 %v43, %v42
    %vm48 = vcmask 261120
    %v50 = vsel %vm48, %v24, 0
    %52 = vmatprep.subr.bf16.mxu0 0
    %53 = vmatpush1.bf16.msra.mxu0 0
    %54 = vmatprep.subr.bf16.mxu0 0
    %55 = vmatpush1.bf16.msra.mxu0 0
    %56 = vmatprep.subr.bf16.mxu0 0
    %57 = vmatpush1.bf16.msra.mxu0 0
    %58 = vmatprep.subr.bf16.mxu0 0
    %59 = vmatpush1.bf16.msra.mxu0 0
    %60 = vmatprep.subr.bf16.mxu0 0
    %61 = vmatpush1.bf16.msra.mxu0 0
    %62 = vmatprep.subr.bf16.mxu0 0
    %63 = vmatpush1.bf16.msra.mxu0 0
    %64 = vmatprep.subr.bf16.mxu0 0
    %65 = vmatpush1.bf16.msra.mxu0 %v45
    %66 = vmatprep.subr.bf16.mxu0 0
    %67 = vmatpush1.bf16.msra.mxu0 %v44
    %68 = vmatprep.subr.bf16.mxu0 0
    %69 = vmatpush2.bf16.msra.mxu0 0
    %70 = vmatprep.subr.bf16.mxu0 0
    %71 = vmatpush2.bf16.msra.mxu0 0
    %72 = vmatprep.subr.bf16.mxu0 0
    %73 = vmatpush2.bf16.msra.mxu0 0
    %74 = vmatprep.subr.bf16.mxu0 0
    %75 = vmatpush2.bf16.msra.mxu0 0
    %76 = vmatprep.subr.bf16.mxu0 0
    %77 = vmatpush2.bf16.msra.mxu0 0
    %78 = vmatprep.subr.bf16.mxu0 0
    %79 = vmatpush2.bf16.msra.mxu0 0
    %80 = vmatprep.subr.bf16.mxu0 0
    %81 = vmatpush2.bf16.msra.mxu0 0
    %82 = vmatprep.subr.bf16.mxu0 0
    %83 = vmatpush2.bf16.msra.mxu0 0
    %84 = vmatprep.mubr.bf16.mxu0 0
    %85 = vmatmul.mubr.bf16.gmra.mxu0 %v50
    %v86 = vpop.f32.mrf.mxu0
    %v87 = vadd.f32 %v34, %v86
    %v88 = vpop.f32.mrf.mxu0
    %v89 = vpop.f32.mrf.mxu0
    %v90 = vadd.f32 %v34, %v89
    %v91 = vpop.f32.mrf.mxu0
    %92 = vdwg.mxu0
    %v93 = vmul.f32 %v87, 0.5
    %v94 = vmul.f32 %v90, 0.5
    %v95 = vmul.f32 %v87, 0.70710677
    %v96 = vmul.f32 %v90, 0.70710677
    %v97 = verf.f32.pop %v95
    %v98 = verf.f32.pop %v96
    %v99 = vadd.f32 %v97, 1.0
    %v100 = vadd.f32 %v98, 1.0
    %v101 = vmul.f32 %v93, %v99
    %v102 = vmul.f32 %v94, %v100
    %v103 = vpack.c.bf16 %v102, %v101
    %v104 = vld [vmem:[%s3] sm:$0xf]
    %v105 = vld [vmem:[%s3 + $0x4] sm:$0xf]
    %v106 = vld [vmem:[%s3 + $0x8] sm:$0xf]
    %v107 = vld [vmem:[%s3 + $0xc] sm:$0xf]
    %v108 = vld [vmem:[%s3 + $0x10] sm:$0xf]
    %v109 = vld [vmem:[%s3 + $0x14] sm:$0xf]
    %v110 = vld [vmem:[%s3 + $0x18] sm:$0xf]
    %v111 = vld [vmem:[%s3 + $0x1c] sm:$0xf]
    %v112 = vld [vmem:[%s3 + $0x20] sm:$0xf]
    %v113 = vld [vmem:[%s3 + $0x24] sm:$0xf]
    %v114 = vld [vmem:[%s3 + $0x28] sm:$0xf]
    %v115 = vld [vmem:[%s3 + $0x2c] sm:$0xf]
    %v116 = vld [vmem:[%s3 + $0x30] sm:$0xf]
    %v117 = vld [vmem:[%s3 + $0x34] sm:$0xf]
    %v118 = vld [vmem:[%s3 + $0x38] sm:$0xf]
    %v119 = vld [vmem:[%s3 + $0x3c] sm:$0xf]
    %v120 = vld [vmem:[%s4] sm:$0x1]
    %v122 = vlaneseq
    %v123 = vshrl.u32 %v122, 7
    %v124 = vsub.s32 0, %v123
    %v125 = vrot.slane %v120, %v124
    %v143 = vunpack.c.l.b16 %v104
    %v144 = vunpack.c.l.b16 %v105
    %v145 = vunpack.c.l.b16 %v106
    %v146 = vunpack.c.l.b16 %v107
    %v147 = vunpack.c.l.b16 %v108
    %v148 = vunpack.c.l.b16 %v109
    %v149 = vunpack.c.l.b16 %v110
    %v150 = vunpack.c.l.b16 %v111
    %v151 = vunpack.c.l.b16 %v112
    %v152 = vunpack.c.l.b16 %v113
    %v153 = vunpack.c.l.b16 %v114
    %v154 = vunpack.c.l.b16 %v115
    %v155 = vunpack.c.l.b16 %v116
    %v156 = vunpack.c.l.b16 %v117
    %v157 = vunpack.c.l.b16 %v118
    %v158 = vunpack.c.l.b16 %v119
    %v159 = vpack.c.b16 %v144, %v143
    %v160 = vpack.c.b16 %v146, %v145
    %v161 = vpack.c.b16 %v148, %v147
    %v162 = vpack.c.b16 %v150, %v149
    %v163 = vpack.c.b16 %v152, %v151
    %v164 = vpack.c.b16 %v154, %v153
    %v165 = vpack.c.b16 %v156, %v155
    %v166 = vpack.c.b16 %v158, %v157
    %175 = vmatprep.subr.bf16.mxu0 0
    %176 = vmatpush1.bf16.msra.mxu0 %v166
    %177 = vmatprep.subr.bf16.mxu0 0
    %178 = vmatpush1.bf16.msra.mxu0 %v165
    %179 = vmatprep.subr.bf16.mxu0 0
    %180 = vmatpush1.bf16.msra.mxu0 %v164
    %181 = vmatprep.subr.bf16.mxu0 0
    %182 = vmatpush1.bf16.msra.mxu0 %v163
    %183 = vmatprep.subr.bf16.mxu0 0
    %184 = vmatpush1.bf16.msra.mxu0 %v162
    %185 = vmatprep.subr.bf16.mxu0 0
    %186 = vmatpush1.bf16.msra.mxu0 %v161
    %187 = vmatprep.subr.bf16.mxu0 0
    %188 = vmatpush1.bf16.msra.mxu0 %v160
    %189 = vmatprep.subr.bf16.mxu0 0
    %190 = vmatpush1.bf16.msra.mxu0 %v159
    %191 = vmatprep.subr.bf16.mxu0 0
    %192 = vmatpush2.bf16.msra.mxu0 0
    %193 = vmatprep.subr.bf16.mxu0 0
    %194 = vmatpush2.bf16.msra.mxu0 0
    %195 = vmatprep.subr.bf16.mxu0 0
    %196 = vmatpush2.bf16.msra.mxu0 0
    %197 = vmatprep.subr.bf16.mxu0 0
    %198 = vmatpush2.bf16.msra.mxu0 0
    %199 = vmatprep.subr.bf16.mxu0 0
    %200 = vmatpush2.bf16.msra.mxu0 0
    %201 = vmatprep.subr.bf16.mxu0 0
    %202 = vmatpush2.bf16.msra.mxu0 0
    %203 = vmatprep.subr.bf16.mxu0 0
    %204 = vmatpush2.bf16.msra.mxu0 0
    %205 = vmatprep.subr.bf16.mxu0 0
    %206 = vmatpush2.bf16.msra.mxu0 0
    %207 = vmatprep.mubr.bf16.mxu0 0
    %208 = vmatmul.mubr.bf16.gmra.mxu0 %v103
    %v209 = vpop.f32.mrf.mxu0
    %v210 = vadd.f32 %v125, %v209
    %v211 = vpop.f32.mrf.mxu0
    %v212 = vpop.f32.mrf.mxu0
    %v213 = vadd.f32 %v125, %v212
    %v214 = vpop.f32.mrf.mxu0
    %215 = vdwg.mxu0
    %216 = vst.msk [vmem:[#allocation2] sm:$0xff] %vm48, %v210
    %217 = vst.msk [vmem:[#allocation2 + $0x8] sm:$0xff] %vm48, %v213
    // Predicated region
    $region22: #{tfmr_mlp_forward.1} parent=1 // pred_check
      _
    $region23: #{tfmr_mlp_forward.1} parent=1 // pred_check_branch
      %219 = sbr.rel (0) target = $region25
    $region24: #{tfmr_mlp_forward.1} parent=1 // pred_region
      %s221 = ssub.s32 256, 256
      %222 = vsyncadd [#allocation3], %s221
      %s223 = sshll.u32 [#allocation2], 4
      %s224 = int_to_ptr.vmem [resolvable:$true] %s223
      %229 = dma.vmem_to_hbm [thread:$0]  %s224, 256, %s5, [#allocation3], 128, 128, 8
    $region25: #{tfmr_mlp_forward.1} parent=1 // pred_fallthru
      _
    // Predicated region
    $region26: #{tfmr_mlp_forward.1} parent=1 // pred_check
      _
    $region27: #{tfmr_mlp_forward.1} parent=1 // pred_check_branch
      %231 = sbr.rel (0) target = $region29
    $region28: #{tfmr_mlp_forward.1} parent=1 // pred_region
      %232 = dma.done [#allocation3], 256
    $region29: #{tfmr_mlp_forward.1} parent=1 // pred_fallthru
      _
    %233 = vsyncpa [#allocation3], 1

</llo_original>
